<compile_context>
chip_gen: v5e
topology: v5e:2x2
jax: 0.10.0
libtpu: 0.0.40
codegen_flags: <defaults>
</compile_context>

<pallas_src>
import functools

import jax
import jax.numpy as jnp
from jax import lax
from jax.experimental import pallas as pl
from jax.experimental.pallas import tpu as pltpu


# ---------------------------------------------------------------------------
# Hardware-aware knobs
# ---------------------------------------------------------------------------
def _vmem_limit_bytes():
    """Generation-aware scoped-VMEM limit (headroom left for compiler scratch)."""
    cap = 128 * 1024 * 1024                       # v5e/v6e physical VMEM
    try:
        info = pltpu.get_tpu_info()
        cap = int(getattr(info, "vmem_capacity_bytes", cap))
    except Exception:                             # no TPU info available: keep default
        pass
    # ~96 MiB on 128-MiB parts (v5e/v6e), ~48 MiB on 64-MiB parts (v7x).
    return min((cap * 3) // 4, 100 * 1024 * 1024)


def _k_tile(d_in, d_out, vmem_cap):
    """Contraction-dim tile for the linear kernels.

    Keep the (d_in, d_out) bf16 weight resident (single K block) when its
    double-buffered footprint fits comfortably; otherwise stream 128-aligned
    K tiles so large-D configs still compile and pipeline (v7x, 64 MiB VMEM).
    """
    w_bytes = 2 * d_in * d_out
    if 2 * w_bytes <= vmem_cap // 2:
        return d_in
    t = 512
    while t >= 128:
        if d_in % t == 0:
            return t
        t -= 128
    return d_in            # no aligned divisor: fall back to an un-tiled block
    # TODO(synk): for very large D on v7x also shrink the row tile so
    # (weight tile + acc + out tile) stays under the 48 MiB budget.


# ---------------------------------------------------------------------------
# Kernel A / C: K-tiled linear  y = bf16(x) @ W + b  with f32 accumulation.
# ---------------------------------------------------------------------------
def _linear_kernel(x_ref, w_ref, b_ref, o_ref, acc_ref):
    kk = pl.program_id(2)

    @pl.when(kk == 0)
    def _init():
        acc_ref[...] = jnp.zeros_like(acc_ref)

    # Cast activations to bf16 in-kernel (VPU, hidden under the MXU) instead of a
    # separate XLA pass over HBM; no-op when x is already bf16.
    acc_ref[...] += jnp.dot(x_ref[0].astype(jnp.bfloat16), w_ref[...],
                            preferred_element_type=jnp.float32)

    @pl.when(kk == pl.num_programs(2) - 1)
    def _finalize():
        o_ref[0] = (acc_ref[...] + b_ref[...]).astype(o_ref.dtype)


def _linear(x, w, b, out_dtype, *, tm, vmem_cap):
    B, S, d_in = x.shape
    d_out = w.shape[1]
    tkk = _k_tile(d_in, d_out, vmem_cap)
    return pl.pallas_call(
        _linear_kernel,
        out_shape=jax.ShapeDtypeStruct((B, S, d_out), out_dtype),
        grid_spec=pltpu.PrefetchScalarGridSpec(
            num_scalar_prefetch=0,
            grid=(B, S // tm, d_in // tkk),
            in_specs=[
                pl.BlockSpec((1, tm, tkk), lambda bi, i, k: (bi, i, k)),
                pl.BlockSpec((tkk, d_out), lambda bi, i, k: (k, 0)),
                pl.BlockSpec((1, d_out), lambda bi, i, k: (0, 0)),
            ],
            out_specs=pl.BlockSpec((1, tm, d_out), lambda bi, i, k: (bi, i, 0)),
            scratch_shapes=[pltpu.VMEM((tm, d_out), jnp.float32)],
        ),
        compiler_params=pltpu.CompilerParams(
            dimension_semantics=("parallel", "parallel", "arbitrary"),
            vmem_limit_bytes=vmem_cap),
    )(x, w, b)


# ---------------------------------------------------------------------------
# Kernel B: flash attention over packed, head-major-padded Q/K/V columns.
# ---------------------------------------------------------------------------
def _flash_attn_kernel(q_ref, k_ref, v_ref, o_ref, m_sc, l_sc, acc_sc, *,
                       num_heads, head_dim_padded):
    H, hdp = num_heads, head_dim_padded
    ki = pl.program_id(2)

    @pl.when(ki == 0)
    def _init():
        m_sc[...] = jnp.full_like(m_sc, -jnp.inf)
        l_sc[...] = jnp.zeros_like(l_sc)
        acc_sc[...] = jnp.zeros_like(acc_sc)

    # Static unroll over heads: every slice below is a lane-aligned, 128-wide
    # column window (hdp % 128 == 0) of the packed block, so there is no
    # transpose / relayout work in the hot loop.
    for h in range(H):
        col = slice(h * hdp, (h + 1) * hdp)
        q_h = q_ref[0, :, col]                       # (tq, hdp) bf16, pre-scaled
        k_h = k_ref[0, :, col]                       # (tk, hdp) bf16
        v_h = v_ref[0, :, col]                       # (tk, hdp) bf16

        # scores (tq, tk): contraction over the padded head dim on the MXU.
        s = lax.dot_general(q_h, k_h, (((1,), (1,)), ((), ())),
                            preferred_element_type=jnp.float32)

        m_prev = m_sc[h]                             # (tq, 1)
        m_new = jnp.maximum(m_prev, s.max(axis=-1, keepdims=True))
        alpha = jnp.exp(m_prev - m_new)
        p = jnp.exp(s - m_new)
        # TODO(synk): if the single EUP binds for tiny head_dim, the exp over
        # (tq, tk) is the inherent cost; avoid adding VPU-side rescale work here.

        l_sc[h] = alpha * l_sc[h] + p.sum(axis=-1, keepdims=True)
        acc_sc[:, col] = alpha * acc_sc[:, col] + jnp.dot(
            p.astype(v_h.dtype), v_h, preferred_element_type=jnp.float32)
        m_sc[h] = m_new

    @pl.when(ki == pl.num_programs(2) - 1)
    def _finalize():
        for h in range(H):
            col = slice(h * hdp, (h + 1) * hdp)
            # Exact reciprocal is effectively free (once per q-tile, EUP slot).
            inv_l = pl.reciprocal(l_sc[h], approx=False)
            o_ref[0, :, col] = (acc_sc[:, col] * inv_l).astype(o_ref.dtype)


# ---------------------------------------------------------------------------
# Wrapper
# ---------------------------------------------------------------------------
def memory_efficient_attention(x, params, num_heads,
                               row_block=None, q_block=None, kv_block=None):
    """Forward pass of MemoryEfficientAttention.

    x: (B, S, D) float32.  params: weights (D, D) stored (in, out), biases (1, D).
    """
    B, S, D = x.shape
    H = num_heads
    assert D % H == 0, "hidden_dim must be divisible by num_heads"
    hd = D // H
    hdp = 128 * (-(-hd // 128))        # pad head_dim to a multiple of 128 (>=128)
    Hp = H * hdp
    scale = 1.0 / float(hd) ** 0.5

    vmem_cap = _vmem_limit_bytes()
    big_vmem = vmem_cap > 64 * 1024 * 1024

    # Tile sizes.  Bigger q-blocks raise the KV loop's arithmetic intensity
    # (K/V re-stream traffic ~ S^2 * Hp / tq); 256-wide kv blocks match the
    # 256-wide v6e/v7x MXU.  v7x (64 MiB VMEM) gets the smaller q-block.
    # TODO(synk): on v5e (128-wide MXU) kv_block=128 is already MXU-matched.
    tm = row_block or min(S, 512)
    tq = q_block or min(S, 512 if big_vmem else 256)
    tk = kv_block or min(S, 256)
    for name, t in (("row_block", tm), ("q_block", tq), ("kv_block", tk)):
        assert S % t == 0, f"{name}={t} must divide seq_len={S}"
        assert t == S or t % 8 == 0, \
            f"{name}={t} must be a multiple of 8 (sublane) or the full seq_len"

    # ---- Weight prep: head-major columns, zero-padded to hdp, scale folded in Q ----
    def _pad_cols(w):                   # (D, D) -> (D, H*hdp)
        w = w.reshape(D, H, hd)
        return jnp.pad(w, ((0, 0), (0, 0), (0, hdp - hd))).reshape(D, Hp)

    def _pad_bias(b):                   # (1, D) -> (1, H*hdp)
        b = b.reshape(1, H, hd)
        return jnp.pad(b, ((0, 0), (0, 0), (0, hdp - hd))).reshape(1, Hp)

    wqkv = jnp.concatenate(
        [_pad_cols(params["wq"] * scale), _pad_cols(params["wk"]),
         _pad_cols(params["wv"])], axis=1).astype(jnp.bfloat16)        # (D, 3*Hp)
    bqkv = jnp.concatenate(
        [_pad_bias(params["bq"] * scale), _pad_bias(params["bk"]),
         _pad_bias(params["bv"])], axis=1).astype(jnp.float32)         # (1, 3*Hp)
    wo = jnp.pad(params["wo"].reshape(H, hd, D),
                 ((0, 0), (0, hdp - hd), (0, 0))).reshape(Hp, D).astype(jnp.bfloat16)
    bo = params["bo"].astype(jnp.float32)                              # (1, D)

    # ---- Kernel A: fused QKV projection -> packed (B, S, 3*Hp) bf16 ----
    qkv = _linear(x, wqkv, bqkv, jnp.bfloat16, tm=tm, vmem_cap=vmem_cap)

    # ---- Kernel B: flash attention on the packed qkv -> (B, S, Hp) bf16 ----
    ctx = pl.pallas_call(
        functools.partial(_flash_attn_kernel, num_heads=H, head_dim_padded=hdp),
        out_shape=jax.ShapeDtypeStruct((B, S, Hp), jnp.bfloat16),
        grid_spec=pltpu.PrefetchScalarGridSpec(
            num_scalar_prefetch=0,
            grid=(B, S // tq, S // tk),
            in_specs=[
                pl.BlockSpec((1, tq, Hp), lambda b, qi, ki: (b, qi, 0)),  # Q cols
                pl.BlockSpec((1, tk, Hp), lambda b, qi, ki: (b, ki, 1)),  # K cols
                pl.BlockSpec((1, tk, Hp), lambda b, qi, ki: (b, ki, 2)),  # V cols
            ],
            out_specs=pl.BlockSpec((1, tq, Hp), lambda b, qi, ki: (b, qi, 0)),
            scratch_shapes=[
                pltpu.VMEM((H, tq, 1), jnp.float32),   # running max m
                pltpu.VMEM((H, tq, 1), jnp.float32),   # running sum l
                pltpu.VMEM((tq, Hp), jnp.float32),     # f32 context accumulator
            ],
        ),
        compiler_params=pltpu.CompilerParams(
            dimension_semantics=("parallel", "parallel", "arbitrary"),
            vmem_limit_bytes=vmem_cap),
    )(qkv, qkv, qkv)

    # ---- Kernel C: output projection -> (B, S, D) in x.dtype ----
    return _linear(ctx, wo, bo, x.dtype, tm=tm, vmem_cap=vmem_cap)


# ---------------------------------------------------------------------------
# Params + pure-JAX reference
# ---------------------------------------------------------------------------
def init_params(key, hidden_dim):
    """Deterministic synthetic init (PyTorch-like uniform bound 1/sqrt(fan_in))."""
    bound = 1.0 / float(hidden_dim) ** 0.5
    keys = jax.random.split(key, 8)

    def w(k):   # stored (in_features, out_features)
        return jax.random.uniform(k, (hidden_dim, hidden_dim), jnp.float32, -bound, bound)

    def b(k):
        return jax.random.uniform(k, (1, hidden_dim), jnp.float32, -bound, bound)

    return {"wq": w(keys[0]), "bq": b(keys[1]),
            "wk": w(keys[2]), "bk": b(keys[3]),
            "wv": w(keys[4]), "bv": b(keys[5]),
            "wo": w(keys[6]), "bo": b(keys[7])}


def reference_attention(x, params, num_heads):
    B, S, D = x.shape
    hd = D // num_heads

    def proj(w, b):
        return (x @ w + b).reshape(B, S, num_heads, hd).transpose(0, 2, 1, 3)

    q = proj(params["wq"], params["bq"])
    k = proj(params["wk"], params["bk"])
    v = proj(params["wv"], params["bv"])
    scores = jnp.einsum("bhqd,bhkd->bhqk", q, k) / jnp.sqrt(jnp.float32(hd))
    attn = jax.nn.softmax(scores, axis=-1)
    ctx = jnp.einsum("bhqk,bhkd->bhqd", attn, v).transpose(0, 2, 1, 3).reshape(B, S, D)
    return ctx @ params["wo"] + params["bo"]


if __name__ == "__main__":
    def run_case(batch, seq_len, hidden_dim, num_heads, **blocks):
        key = jax.random.PRNGKey(0)
        kx, kp = jax.random.split(key)
        x = jax.random.normal(kx, (batch, seq_len, hidden_dim), jnp.float32)
        params = init_params(kp, hidden_dim)

        out = jax.block_until_ready(
            memory_efficient_attention(x, params, num_heads, **blocks))
        ref = reference_attention(x, params, num_heads)

        assert out.shape == (batch, seq_len, hidden_dim)
        # bf16 matmul inputs -> relaxed tolerance vs the f32 reference.
        err = jnp.max(jnp.abs(out - ref))
        assert jnp.allclose(out, ref, atol=3e-2, rtol=3e-2), (
            f"mismatch at {(batch, seq_len, hidden_dim, num_heads)}: max abs err {err}")

    # Small shape consistent with the module (single q/kv block).
    run_case(batch=2, seq_len=8, hidden_dim=32, num_heads=4)
    # Larger shape exercising the multi-block online softmax (2 q-blocks x 2 kv-blocks)
    # with (8,128)-aligned tiles.
    run_case(batch=2, seq_len=256, hidden_dim=128, num_heads=4,
             q_block=128, kv_block=128)

    print("KERNEL_OK")
</pallas_src>

<mosaic_0001>
module attributes {stable_mosaic.version = 11 : i64} {
  func.func @_linear_kernel(%arg0: i32, %arg1: i32, %arg2: i32, %arg3: memref<1x8x32xf32, #tpu.memory_space<vmem>>, %arg4: memref<32x1536xbf16, #tpu.memory_space<vmem>>, %arg5: memref<1x1536xf32, #tpu.memory_space<vmem>>, %arg6: memref<1x8x1536xbf16, #tpu.memory_space<vmem>>, %arg7: memref<8x1536xf32, #tpu.memory_space<vmem>>) attributes {dimension_semantics = [#tpu.dimension_semantics<parallel>, #tpu.dimension_semantics<parallel>, #tpu.dimension_semantics<arbitrary>], iteration_bounds = array<i64: 2, 1, 1>, scalar_prefetch = 0 : i64, scratch_operands = 1 : i64, tpu.core_type = #tpu.core_type<tc>, window_params = [{transform_indices = @transform_0, window_bounds = array<i64: 1, 8, 32>}, {transform_indices = @transform_1, window_bounds = array<i64: 32, 1536>}, {pipeline_mode = #tpu.pipeline_mode<synchronous>, transform_indices = @transform_2, window_bounds = array<i64: 1, 1536>}, {transform_indices = @transform_3, window_bounds = array<i64: 1, 8, 1536>}]} {
    %c0_i32 = arith.constant 0 : i32
    %0 = arith.cmpi eq, %arg2, %c0_i32 : i32
    %1 = arith.extui %0 : i1 to i32
    %c0_i32_0 = arith.constant 0 : i32
    %2 = arith.cmpi ne, %1, %c0_i32_0 : i32
    scf.if %2 {
      %cst_11 = arith.constant 0.000000e+00 : f32
      %14 = vector.broadcast %cst_11 : f32 to vector<8x1536xf32>
      %c0_12 = arith.constant 0 : index
      %c0_13 = arith.constant 0 : index
      %15 = vector.load %arg7[%c0_12, %c0_13] : memref<8x1536xf32, #tpu.memory_space<vmem>>, vector<8x1536xf32>
      tpu.vector_store %arg7[%c0_12, %c0_13], %14 {strides = array<i32>} : memref<8x1536xf32, #tpu.memory_space<vmem>>, vector<8x1536xf32>,
    } else {
    }
    %c0 = arith.constant 0 : index
    %c0_1 = arith.constant 0 : index
    %3 = vector.load %arg7[%c0, %c0_1] : memref<8x1536xf32, #tpu.memory_space<vmem>>, vector<8x1536xf32>
    %c0_2 = arith.constant 0 : index
    %c0_3 = arith.constant 0 : index
    %c0_4 = arith.constant 0 : index
    %4 = vector.load %arg3[%c0_2, %c0_3, %c0_4] : memref<1x8x32xf32, #tpu.memory_space<vmem>>, vector<1x8x32xf32>
    %5 = vector.shape_cast %4 : vector<1x8x32xf32> to vector<8x32xf32>
    %6 = arith.truncf %5 : vector<8x32xf32> to vector<8x32xbf16>
    %c0_5 = arith.constant 0 : index
    %c0_6 = arith.constant 0 : index
    %7 = vector.load %arg4[%c0_5, %c0_6] : memref<32x1536xbf16, #tpu.memory_space<vmem>>, vector<32x1536xbf16>
    %cst = arith.constant dense<0.000000e+00> : vector<8x1536xf32>
    %8 = tpu.matmul %6, %7, %cst {dimension_numbers = #tpu.dot_dimension_numbers<[1], [0], [0], [1], [0, 0, 1, 1], [], []>} : vector<8x32xbf16>, vector<32x1536xbf16>, vector<8x1536xf32> -> vector<8x1536xf32>
    %9 = arith.addf %3, %8 : vector<8x1536xf32>
    %c0_7 = arith.constant 0 : index
    %c0_8 = arith.constant 0 : index
    %10 = vector.load %arg7[%c0_7, %c0_8] : memref<8x1536xf32, #tpu.memory_space<vmem>>, vector<8x1536xf32>
    tpu.vector_store %arg7[%c0_7, %c0_8], %9 {strides = array<i32>} : memref<8x1536xf32, #tpu.memory_space<vmem>>, vector<8x1536xf32>,
    %c0_i32_9 = arith.constant 0 : i32
    %11 = arith.cmpi eq, %arg2, %c0_i32_9 : i32
    %12 = arith.extui %11 : i1 to i32
    %c0_i32_10 = arith.constant 0 : i32
    %13 = arith.cmpi ne, %12, %c0_i32_10 : i32
    scf.if %13 {
      %c0_11 = arith.constant 0 : index
      %c0_12 = arith.constant 0 : index
      %14 = vector.load %arg7[%c0_11, %c0_12] : memref<8x1536xf32, #tpu.memory_space<vmem>>, vector<8x1536xf32>
      %c0_13 = arith.constant 0 : index
      %c0_14 = arith.constant 0 : index
      %15 = vector.load %arg5[%c0_13, %c0_14] : memref<1x1536xf32, #tpu.memory_space<vmem>>, vector<1x1536xf32>
      %16 = vector.broadcast %15 : vector<1x1536xf32> to vector<8x1536xf32>
      %17 = arith.addf %14, %16 : vector<8x1536xf32>
      %18 = arith.truncf %17 : vector<8x1536xf32> to vector<8x1536xbf16>
      %c0_15 = arith.constant 0 : index
      %c0_16 = arith.constant 0 : index
      %c0_17 = arith.constant 0 : index
      %19 = vector.load %arg6[%c0_15, %c0_16, %c0_17] : memref<1x8x1536xbf16, #tpu.memory_space<vmem>>, vector<1x8x1536xbf16>
      %20 = vector.shape_cast %19 : vector<1x8x1536xbf16> to vector<8x1536xbf16>
      %21 = vector.shape_cast %18 : vector<8x1536xbf16> to vector<1x8x1536xbf16>
      tpu.vector_store %arg6[%c0_15, %c0_16, %c0_17], %21 {strides = array<i32>} : memref<1x8x1536xbf16, #tpu.memory_space<vmem>>, vector<1x8x1536xbf16>,
    } else {
    }
    return
  }
  func.func @transform_0(%arg0: i32, %arg1: i32, %arg2: i32) -> (i32, i32, i32) {
    %c0_i32 = arith.constant 0 : i32
    return %arg0, %arg1, %arg2 : i32, i32, i32
  }
  func.func @transform_1(%arg0: i32, %arg1: i32, %arg2: i32) -> (i32, i32) {
    %c0_i32 = arith.constant 0 : i32
    %c0_i32_0 = arith.constant 0 : i32
    return %arg2, %c0_i32 : i32, i32
  }
  func.func @transform_2(%arg0: i32, %arg1: i32, %arg2: i32) -> (i32, i32) {
    %c0_i32 = arith.constant 0 : i32
    %c0_i32_0 = arith.constant 0 : i32
    %c0_i32_1 = arith.constant 0 : i32
    return %c0_i32, %c0_i32_0 : i32, i32
  }
  func.func @transform_3(%arg0: i32, %arg1: i32, %arg2: i32) -> (i32, i32, i32) {
    %c0_i32 = arith.constant 0 : i32
    %c0_i32_0 = arith.constant 0 : i32
    return %arg0, %arg1, %c0_i32 : i32, i32, i32
  }
}

</mosaic_0001>

<llo_original>
// kernel: tpu_custom_call.1
$region0: #{tpu_custom_call.1}
  #allocation0 [shape = 'u32[]', space=smem, size = 0x4, offset = 0x4, fixed_abs, tag = 'smem constant byte address 0x4 - core index']
  #allocation1 [shape = 'u32[72,128]{1,0:T(1,128)}', space=vmem, size = 0x9000, scoped, tag = 'internal scratch']
  #allocation2 [shape = 'f32[8,1536]{1,0:T(8,128)}', space=vmem, size = 0xc000, scoped, tag = 'scratch operand']
  %s0 = inlined_call_operand.hbm [shape: f32[2,8,32], index: 0, kind: input, shape index: {}]
  %s1 = inlined_call_operand.hbm [shape: bf16[32,1536], index: 1, kind: input, shape index: {}]
  %s2 = inlined_call_operand.hbm [shape: f32[1,1536], index: 2, kind: input, shape index: {}]
  %s3 = inlined_call_operand.hbm [shape: bf16[2,8,1536], index: 3, kind: output, shape index: {}]
  %s4 = sld [smem:[#allocation0]]
  $region65: #{tpu_custom_call.1} parent=0
    _
  %s6 = ssub.s32 1, %s4
  %s7 = scalar_select 0, %s6, %s4
  $region1: #{tpu_custom_call.1} parent=0
    #allocation3 [shape = 'u8[8192]{0}', space=vmem, size = 0x2000, scoped, tag = 'input window, operand 0']
    #allocation4 [shape = 's32[2]{0}', space=sflag, size = 0x8, scoped, tag = 'scoped memory for tpu_custom_call.1']
    #allocation5 [shape = 's32[2]{0}', space=sflag, size = 0x8, scoped, tag = 'scoped memory for tpu_custom_call.1']
    #allocation6 [shape = 'u8[98304]{0}', space=vmem, size = 0x18000, scoped, tag = 'input window, operand 1, single buffered']
    #allocation7 [shape = 's32[1]{0}', space=sflag, size = 0x4, scoped, tag = 'scoped memory for tpu_custom_call.1']
    #allocation8 [shape = 'u8[6144]{0}', space=vmem, size = 0x1800, scoped, tag = 'input window, operand 2, single buffered']
    #allocation9 [shape = 'u8[49152]{0}', space=vmem, size = 0xc000, scoped, tag = 'output window, operand 0']
    %8 = vsyncpa [#allocation4], 0
    %s9 = scalar_lea.sflag [#allocation4], 1
    %10 = vsyncpa %s9, 0
    %11 = vsyncpa [#allocation7], 0
    %12 = vsyncpa [#allocation5], 0
    %s13 = scalar_lea.sflag [#allocation5], 1
    %14 = vsyncpa %s13, 0
    loop: start=0, step=1, limit=4
    $region2: #{tpu_custom_call.1} parent=1 // loop_pre_header
      _
    $region3: #{tpu_custom_call.1} parent=1 // loop_header
      %s16 = sphi 0, %s20
      %p17 = scmp.ge.s32.totalorder %s16, 4
      %s23 = sphi 0, %s42
      %s24 = sphi 0, %s38
      %s25 = sphi 0, %s34
      %s26 = sphi 0, %s23
      %s27 = sphi 0, %s24
      %s28 = sphi 0, %s25
      %s29 = sphi 0, %s26
      %s30 = sphi 0, %s27
      %s31 = sphi 0, %s28
      %s49 = sphi 0, %s51
      %s52 = sphi 0, %s49
      %s53 = sphi 0, %s52
      %s69 = sphi 0, %s53
      %s75 = sphi 0, %s77
      %s78 = sphi 0, %s75
      %s79 = sphi 0, %s78
      %s95 = sphi 0, %s79
      %s99 = sphi 0, %s99
      %s101 = sphi 0, %s99
      %s102 = sphi 0, %s101
      %s116 = sphi 0, %s102
      %s124 = sphi 0, %s126
      %s127 = sphi 0, %s124
      %s128 = sphi 0, %s127
      %s144 = sphi 0, %s128
    $region4: #{tpu_custom_call.1} parent=1 // loop_header_branch
      %19 = sbr.rel (%p17) target = $region8
    $region5: #{tpu_custom_call.1} parent=1 // loop_body
      %s21 = ssub.s32 %s16, 1
      %s22 = ssub.s32 %s16, 2
      %s32 = sadd.s32 1, %s25
      %p33 = scmp.ge.s32.totalorder %s32, 1
      %s34 = scalar_select %p33, 0, %s32
      %s35 = sadd.s32 1, %s24
      %s36 = scalar_select %p33, %s35, %s24
      %p37 = scmp.ge.s32.totalorder %s36, 1
      %s38 = scalar_select %p37, 0, %s36
      %s39 = sadd.s32 1, %s23
      %s40 = scalar_select %p37, %s39, %s23
      %p41 = scmp.ge.s32.totalorder %s40, 2
      %s42 = scalar_select %p41, 0, %s40
      %s43 = ssub.s32 %s23, %s42
      %s44 = ssub.s32 %s24, %s38
      %s45 = sor.u32 %s43, %s44
      %s46 = ssub.s32 %s25, %s34
      %s47 = sor.u32 %s45, %s46
      %p48 = scmp.eq.s32.totalorder %s47, 0
      %s50 = sadd.s32 %s49, 1
      %s51 = scalar_select %p48, %s49, %s50
      %p54 = pneg %p48
      %p55 = scmp.eq.s32.totalorder %s16, 1
      %p56 = por %p54, %p55
      %p57 = scmp.ne.s32.totalorder %s49, %s52
      %p58 = scmp.eq.s32.totalorder %s16, 0
      %p59 = por %p57, %p58
      %p60 = scmp.ne.s32.totalorder %s49, %s52
      %p61 = scmp.eq.s32.totalorder %s21, 1
      %p62 = por %p60, %p61
      %p63 = scmp.ne.s32.totalorder %s52, %s53
      %p64 = scmp.eq.s32.totalorder %s21, 0
      %p65 = por %p63, %p64
      %p66 = scmp.ne.s32.totalorder %s52, %s53
      %p67 = scmp.eq.s32.totalorder %s22, 1
      %p68 = por %p66, %p67
      %p70 = scmp.ne.s32.totalorder %s53, %s69
      %p71 = scmp.eq.s32.totalorder %s22, 0
      %p72 = por %p70, %p71
      %s73 = ssub.s32 %s25, %s34
      %p74 = scmp.eq.s32.totalorder %s73, 0
      %s76 = sadd.s32 %s75, 1
      %s77 = scalar_select %p74, %s75, %s76
      %p80 = pneg %p74
      %p81 = scmp.eq.s32.totalorder %s16, 1
      %p82 = por %p80, %p81
      %p83 = scmp.ne.s32.totalorder %s75, %s78
      %p84 = scmp.eq.s32.totalorder %s16, 0
      %p85 = por %p83, %p84
      %p86 = scmp.ne.s32.totalorder %s75, %s78
      %p87 = scmp.eq.s32.totalorder %s21, 1
      %p88 = por %p86, %p87
      %p89 = scmp.ne.s32.totalorder %s78, %s79
      %p90 = scmp.eq.s32.totalorder %s21, 0
      %p91 = por %p89, %p90
      %p92 = scmp.ne.s32.totalorder %s78, %s79
      %p93 = scmp.eq.s32.totalorder %s22, 1
      %p94 = por %p92, %p93
      %p96 = scmp.ne.s32.totalorder %s79, %s95
      %p97 = scmp.eq.s32.totalorder %s22, 0
      %p98 = por %p96, %p97
      %s100 = sadd.s32 %s99, 1
      %p103 = scmp.eq.s32.totalorder %s16, 1
      %p104 = scmp.ne.s32.totalorder %s99, %s101
      %p105 = scmp.eq.s32.totalorder %s16, 0
      %p106 = por %p104, %p105
      %p107 = scmp.ne.s32.totalorder %s99, %s101
      %p108 = scmp.eq.s32.totalorder %s21, 1
      %p109 = por %p107, %p108
      %p110 = scmp.ne.s32.totalorder %s101, %s102
      %p111 = scmp.eq.s32.totalorder %s21, 0
      %p112 = por %p110, %p111
      %p113 = scmp.ne.s32.totalorder %s101, %s102
      %p114 = scmp.eq.s32.totalorder %s22, 1
      %p115 = por %p113, %p114
      %p117 = scmp.ne.s32.totalorder %s102, %s116
      %p118 = scmp.eq.s32.totalorder %s22, 0
      %p119 = por %p117, %p118
      %s120 = ssub.s32 %s23, %s42
      %s121 = ssub.s32 %s24, %s38
      %s122 = sor.u32 %s120, %s121
      %p123 = scmp.eq.s32.totalorder %s122, 0
      %s125 = sadd.s32 %s124, 1
      %s126 = scalar_select %p123, %s124, %s125
      %p129 = pneg %p123
      %p130 = scmp.eq.s32.totalorder %s16, 1
      %p131 = por %p129, %p130
      %p132 = scmp.ne.s32.totalorder %s124, %s127
      %p133 = scmp.eq.s32.totalorder %s16, 0
      %p134 = por %p132, %p133
      %p135 = scmp.ne.s32.totalorder %s124, %s127
      %p136 = scmp.eq.s32.totalorder %s21, 1
      %p137 = por %p135, %p136
      %p138 = scmp.ne.s32.totalorder %s127, %s128
      %p139 = scmp.eq.s32.totalorder %s21, 0
      %p140 = por %p138, %p139
      %p141 = scmp.ne.s32.totalorder %s127, %s128
      %p142 = scmp.eq.s32.totalorder %s22, 1
      %p143 = por %p141, %p142
      %p145 = scmp.ne.s32.totalorder %s128, %s144
      %p146 = scmp.eq.s32.totalorder %s22, 0
      %p147 = por %p145, %p146
      %p148 = scmp.le.s32.totalorder 1, %s16
      %p149 = scmp.lt.s32.totalorder %s16, 3
      %p150 = pnand %p148, %p149
      %p151 = pneg %p150
      // Predicated region
      $region9: #{tpu_custom_call.1} parent=5 // pred_check
        _
      $region10: #{tpu_custom_call.1} parent=5 // pred_check_branch
        %153 = sbr.rel (%p150) target = $region12
      $region11: #{tpu_custom_call.1} parent=5 // pred_region
        %s154 = ssub.s32 %s16, 1
        // Predicated region
        $region13: #{tpu_custom_call.1} parent=11 // pred_check
          %p155 = pneg %p91
        $region14: #{tpu_custom_call.1} parent=11 // pred_check_branch
          %157 = sbr.rel (%p155) target = $region16
        $region15: #{tpu_custom_call.1} parent=11 // pred_region
          %s158 = smul.u32 4, %s28
          %160 = vsyncadd [#allocation7], 0
          %s161 = smul.addr %s158, 12
          %s162 = smul.addr %s161, 4
          %s163 = scalar_lea.hbm %s1, %s162
          %s164 = sshll.u32 %s163, 4
          %s165 = int_to_ptr.hbm [resolvable:$true] %s164
          %s166 = sshll.u32 [#allocation6], 4
          %s167 = int_to_ptr.vmem [resolvable:$true] %s166
          %172 = dma.hbm_to_vmem [thread:$0]  %s165, 3072, %s167, [#allocation7], 768, 768, 48
        $region16: #{tpu_custom_call.1} parent=11 // pred_fallthru
          _
        // Predicated region
        $region17: #{tpu_custom_call.1} parent=11 // pred_check
          %p173 = pneg %p112
        $region18: #{tpu_custom_call.1} parent=11 // pred_check_branch
          %175 = sbr.rel (%p173) target = $region20
        $region19: #{tpu_custom_call.1} parent=11 // pred_region
          %177 = vsyncadd [#allocation7], 0
          %s179 = sshll.u32 %s2, 4
          %s180 = int_to_ptr.hbm [resolvable:$true] %s179
          %s181 = sshll.u32 [#allocation8], 4
          %s182 = int_to_ptr.vmem [resolvable:$true] %s181
          %184 = dma.hbm_to_vmem [thread:$0]  %s180, 192, %s182, [#allocation7]
        $region20: #{tpu_custom_call.1} parent=11 // pred_fallthru
          _
      $region12: #{tpu_custom_call.1} parent=5 // pred_fallthru
        _
      %p185 = scmp.lt.s32.totalorder %s16, 2
      // Predicated region
      $region21: #{tpu_custom_call.1} parent=5 // pred_check
        %p186 = pneg %p185
      $region22: #{tpu_custom_call.1} parent=5 // pred_check_branch
        %188 = sbr.rel (%p186) target = $region24
      $region23: #{tpu_custom_call.1} parent=5 // pred_region
        // Predicated region
        $region25: #{tpu_custom_call.1} parent=23 // pred_check
          %p189 = pneg %p59
        $region26: #{tpu_custom_call.1} parent=23 // pred_check_branch
          %191 = sbr.rel (%p189) target = $region28
        $region27: #{tpu_custom_call.1} parent=23 // pred_region
          %s192 = sand.u32 %s49, 1
          %s193 = scalar_lea.sflag [#allocation4], %s192
          %s194 = sand.u32 %s49, 1
          %s195 = smul.addr %s194, 8
          %s196 = scalar_lea.vmem [#allocation3], %s195
          %198 = vsyncadd %s193, 0
          %s199 = sadd.s32 %s25, %s24
          %s200 = sadd.s32 %s199, %s23
          %s201 = smul.addr %s200, 8
          %s202 = scalar_lea.hbm %s0, %s201
          %s204 = sshll.u32 %s202, 4
          %s205 = int_to_ptr.hbm [resolvable:$true] %s204
          %s206 = sshll.u32 %s196, 4
          %s207 = int_to_ptr.vmem [resolvable:$true] %s206
          %209 = dma.hbm_to_vmem [thread:$0]  %s205, 128, %s207, %s193
        $region28: #{tpu_custom_call.1} parent=23 // pred_fallthru
          _
      $region24: #{tpu_custom_call.1} parent=5 // pred_fallthru
        _
      %p210 = scmp.le.s32.totalorder 1, %s16
      %p211 = scmp.lt.s32.totalorder %s16, 3
      %p212 = pnand %p210, %p211
      %p213 = pneg %p212
      // Predicated region
      $region29: #{tpu_custom_call.1} parent=5 // pred_check
        _
      $region30: #{tpu_custom_call.1} parent=5 // pred_check_branch
        %215 = sbr.rel (%p212) target = $region32
      $region31: #{tpu_custom_call.1} parent=5 // pred_region
        %s216 = ssub.s32 %s16, 1
        %s217 = sand.u32 %s52, 1
        %s218 = scalar_lea.sflag [#allocation4], %s217
        %s219 = sand.u32 %s52, 1
        %s220 = smul.addr %s219, 8
        %s221 = scalar_lea.vmem [#allocation3], %s220
        // Predicated region
        $region33: #{tpu_custom_call.1} parent=31 // pred_check
          %p222 = pneg %p65
        $region34: #{tpu_custom_call.1} parent=31 // pred_check_branch
          %224 = sbr.rel (%p222) target = $region36
        $region35: #{tpu_custom_call.1} parent=31 // pred_region
          %226 = dma.done %s218, 128
        $region36: #{tpu_custom_call.1} parent=31 // pred_fallthru
          _
        // Predicated region
        $region37: #{tpu_custom_call.1} parent=31 // pred_check
          %p227 = pneg %p91
        $region38: #{tpu_custom_call.1} parent=31 // pred_check_branch
          %229 = sbr.rel (%p227) target = $region40
        $region39: #{tpu_custom_call.1} parent=31 // pred_region
          %231 = dma.done [#allocation7], 3072
        $region40: #{tpu_custom_call.1} parent=31 // pred_fallthru
          _
        // Predicated region
        $region41: #{tpu_custom_call.1} parent=31 // pred_check
          %p232 = pneg %p112
        $region42: #{tpu_custom_call.1} parent=31 // pred_check_branch
          %234 = sbr.rel (%p232) target = $region44
        $region43: #{tpu_custom_call.1} parent=31 // pred_region
          %236 = dma.done [#allocation7], 192
        $region44: #{tpu_custom_call.1} parent=31 // pred_fallthru
          _
        %s237 = sand.u32 %s52, 1
        %s238 = scalar_lea.sflag [#allocation4], %s237
        %s239 = sand.u32 %s52, 1
        %s240 = smul.addr %s239, 8
        %s241 = scalar_lea.vmem [#allocation3], %s240
        %p242 = pneg %p65
        %p243 = pneg %p62
        %p244 = pneg %p91
        %p245 = pneg %p88
        %p246 = pneg %p112
        %p247 = pneg %p109
        %p248 = pneg %p140
        %p249 = pneg %p137
        %s250 = sand.u32 %s127, 1
        %s251 = scalar_lea.sflag [#allocation5], %s250
        %s252 = sand.u32 %s127, 1
        %s253 = smul.addr %s252, 48
        %s254 = scalar_lea.vmem [#allocation9], %s253
        %s255 = smul.u32 4, %s28
        %p257 = scmp.eq.s32.totalorder %s28, 0
        // Predicated region
        $region45: #{tpu_custom_call.1} parent=31 // pred_check
          %p258 = pneg %p257
        $region46: #{tpu_custom_call.1} parent=31 // pred_check_branch
          %260 = sbr.rel (%p258) target = $region48
        $region47: #{tpu_custom_call.1} parent=31 // pred_region
          %261 = vst [vmem:[#allocation2] sm:$0xff] 0.0
          %262 = vst [vmem:[#allocation2 + $0x8] sm:$0xff] 0.0
          %263 = vst [vmem:[#allocation2 + $0x10] sm:$0xff] 0.0
          %264 = vst [vmem:[#allocation2 + $0x18] sm:$0xff] 0.0
          %265 = vst [vmem:[#allocation2 + $0x20] sm:$0xff] 0.0
          %266 = vst [vmem:[#allocation2 + $0x28] sm:$0xff] 0.0
          %267 = vst [vmem:[#allocation2 + $0x30] sm:$0xff] 0.0
          %268 = vst [vmem:[#allocation2 + $0x38] sm:$0xff] 0.0
          %269 = vst [vmem:[#allocation2 + $0x40] sm:$0xff] 0.0
          %270 = vst [vmem:[#allocation2 + $0x48] sm:$0xff] 0.0
          %271 = vst [vmem:[#allocation2 + $0x50] sm:$0xff] 0.0
          %272 = vst [vmem:[#allocation2 + $0x58] sm:$0xff] 0.0
        $region48: #{tpu_custom_call.1} parent=31 // pred_fallthru
          _
        %v273 = vld [vmem:[#allocation2] sm:$0xff]
        %v274 = vld [vmem:[#allocation2 + $0x8] sm:$0xff]
        %v275 = vld [vmem:[#allocation2 + $0x10] sm:$0xff]
        %v276 = vld [vmem:[#allocation2 + $0x18] sm:$0xff]
        %v277 = vld [vmem:[#allocation2 + $0x20] sm:$0xff]
        %v278 = vld [vmem:[#allocation2 + $0x28] sm:$0xff]
        %v279 = vld [vmem:[#allocation2 + $0x30] sm:$0xff]
        %v280 = vld [vmem:[#allocation2 + $0x38] sm:$0xff]
        %v281 = vld [vmem:[#allocation2 + $0x40] sm:$0xff]
        %v282 = vld [vmem:[#allocation2 + $0x48] sm:$0xff]
        %v283 = vld [vmem:[#allocation2 + $0x50] sm:$0xff]
        %v284 = vld [vmem:[#allocation2 + $0x58] sm:$0xff]
        %v285 = vld [vmem:[%s221] sm:$0xff]
        %v286 = vpack.c.bf16 %v285, %v285
        %v287 = vld [vmem:[#allocation6] sm:$0xff]
        %v288 = vld [vmem:[#allocation6 + $0x8] sm:$0xff]
        %v289 = vld [vmem:[#allocation6 + $0x10] sm:$0xff]
        %v290 = vld [vmem:[#allocation6 + $0x18] sm:$0xff]
        %v291 = vld [vmem:[#allocation6 + $0x20] sm:$0xff]
        %v292 = vld [vmem:[#allocation6 + $0x28] sm:$0xff]
        %v293 = vld [vmem:[#allocation6 + $0x30] sm:$0xff]
        %v294 = vld [vmem:[#allocation6 + $0x38] sm:$0xff]
        %v295 = vld [vmem:[#allocation6 + $0x40] sm:$0xff]
        %v296 = vld [vmem:[#allocation6 + $0x48] sm:$0xff]
        %v297 = vld [vmem:[#allocation6 + $0x50] sm:$0xff]
        %v298 = vld [vmem:[#allocation6 + $0x58] sm:$0xff]
        %v299 = vld [vmem:[#allocation6 + $0x60] sm:$0xff]
        %v300 = vld [vmem:[#allocation6 + $0x68] sm:$0xff]
        %v301 = vld [vmem:[#allocation6 + $0x70] sm:$0xff]
        %v302 = vld [vmem:[#allocation6 + $0x78] sm:$0xff]
        %v303 = vld [vmem:[#allocation6 + $0x80] sm:$0xff]
        %v304 = vld [vmem:[#allocation6 + $0x88] sm:$0xff]
        %v305 = vld [vmem:[#allocation6 + $0x90] sm:$0xff]
        %v306 = vld [vmem:[#allocation6 + $0x98] sm:$0xff]
        %v307 = vld [vmem:[#allocation6 + $0xa0] sm:$0xff]
        %v308 = vld [vmem:[#allocation6 + $0xa8] sm:$0xff]
        %v309 = vld [vmem:[#allocation6 + $0xb0] sm:$0xff]
        %v310 = vld [vmem:[#allocation6 + $0xb8] sm:$0xff]
        %v335 = vunpack.c.l.b16 %v287
        %v336 = vunpack.c.h.b16 %v287
        %v337 = vunpack.c.l.b16 %v288
        %v338 = vunpack.c.h.b16 %v288
        %v339 = vunpack.c.l.b16 %v289
        %v340 = vunpack.c.h.b16 %v289
        %v341 = vunpack.c.l.b16 %v290
        %v342 = vunpack.c.h.b16 %v290
        %v343 = vunpack.c.l.b16 %v291
        %v344 = vunpack.c.h.b16 %v291
        %v345 = vunpack.c.l.b16 %v292
        %v346 = vunpack.c.h.b16 %v292
        %v347 = vunpack.c.l.b16 %v293
        %v348 = vunpack.c.h.b16 %v293
        %v349 = vunpack.c.l.b16 %v294
        %v350 = vunpack.c.h.b16 %v294
        %v351 = vunpack.c.l.b16 %v295
        %v352 = vunpack.c.h.b16 %v295
        %v353 = vunpack.c.l.b16 %v296
        %v354 = vunpack.c.h.b16 %v296
        %v355 = vunpack.c.l.b16 %v297
        %v356 = vunpack.c.h.b16 %v297
        %v357 = vunpack.c.l.b16 %v298
        %v358 = vunpack.c.h.b16 %v298
        %v359 = vunpack.c.l.b16 %v299
        %v360 = vunpack.c.h.b16 %v299
        %v361 = vunpack.c.l.b16 %v300
        %v362 = vunpack.c.h.b16 %v300
        %v363 = vunpack.c.l.b16 %v301
        %v364 = vunpack.c.h.b16 %v301
        %v365 = vunpack.c.l.b16 %v302
        %v366 = vunpack.c.h.b16 %v302
        %v367 = vunpack.c.l.b16 %v303
        %v368 = vunpack.c.h.b16 %v303
        %v369 = vunpack.c.l.b16 %v304
        %v370 = vunpack.c.h.b16 %v304
        %v371 = vunpack.c.l.b16 %v305
        %v372 = vunpack.c.h.b16 %v305
        %v373 = vunpack.c.l.b16 %v306
        %v374 = vunpack.c.h.b16 %v306
        %v375 = vunpack.c.l.b16 %v307
        %v376 = vunpack.c.h.b16 %v307
        %v377 = vunpack.c.l.b16 %v308
        %v378 = vunpack.c.h.b16 %v308
        %v379 = vunpack.c.l.b16 %v309
        %v380 = vunpack.c.h.b16 %v309
        %v381 = vunpack.c.l.b16 %v310
        %v382 = vunpack.c.h.b16 %v310
        %v383 = vpack.c.b16 %v347, %v335
        %v384 = vpack.c.b16 %v348, %v336
        %v385 = vpack.c.b16 %v349, %v337
        %v386 = vpack.c.b16 %v350, %v338
        %v387 = vpack.c.b16 %v351, %v339
        %v388 = vpack.c.b16 %v352, %v340
        %v389 = vpack.c.b16 %v353, %v341
        %v390 = vpack.c.b16 %v354, %v342
        %v391 = vpack.c.b16 %v355, %v343
        %v392 = vpack.c.b16 %v356, %v344
        %v393 = vpack.c.b16 %v357, %v345
        %v394 = vpack.c.b16 %v358, %v346
        %v395 = vpack.c.b16 %v371, %v359
        %v396 = vpack.c.b16 %v372, %v360
        %v397 = vpack.c.b16 %v373, %v361
        %v398 = vpack.c.b16 %v374, %v362
        %v399 = vpack.c.b16 %v375, %v363
        %v400 = vpack.c.b16 %v376, %v364
        %v401 = vpack.c.b16 %v377, %v365
        %v402 = vpack.c.b16 %v378, %v366
        %v403 = vpack.c.b16 %v379, %v367
        %v404 = vpack.c.b16 %v380, %v368
        %v405 = vpack.c.b16 %v381, %v369
        %v406 = vpack.c.b16 %v382, %v370
        %vm431 = vcmask 261120
        %v433 = vsel %vm431, %v286, 0
        %435 = vmatpush.bf16.msra.mxu0 0
        %436 = vmatpush.bf16.msra.mxu0 0
        %437 = vmatpush.bf16.msra.mxu0 0
        %438 = vmatpush.bf16.msra.mxu0 0
        %439 = vmatpush.bf16.msra.mxu0 0
        %440 = vmatpush.bf16.msra.mxu0 0
        %441 = vmatpush.bf16.msra.mxu0 %v395
        %442 = vmatpush.bf16.msra.mxu0 %v383
        %443 = vmatmul.bf16.gmra.mxu0 %v433
        %v444 = vpop.f32.mrf.mxu0
        %v445 = vadd.f32 0.0, %v444
        %v446 = vpop.f32.mrf.mxu0
        %447 = vdwg.mxu0
        %448 = vmatpush.bf16.msra.mxu0 0
        %449 = vmatpush.bf16.msra.mxu0 0
        %450 = vmatpush.bf16.msra.mxu0 0
        %451 = vmatpush.bf16.msra.mxu0 0
        %452 = vmatpush.bf16.msra.mxu0 0
        %453 = vmatpush.bf16.msra.mxu0 0
        %454 = vmatpush.bf16.msra.mxu0 %v396
        %455 = vmatpush.bf16.msra.mxu0 %v384
        %456 = vmatmul.bf16.gmra.mxu0 %v433
        %v457 = vpop.f32.mrf.mxu0
        %v458 = vadd.f32 0.0, %v457
        %v459 = vpop.f32.mrf.mxu0
        %460 = vdwg.mxu0
        %461 = vmatpush.bf16.msra.mxu0 0
        %462 = vmatpush.bf16.msra.mxu0 0
        %463 = vmatpush.bf16.msra.mxu0 0
        %464 = vmatpush.bf16.msra.mxu0 0
        %465 = vmatpush.bf16.msra.mxu0 0
        %466 = vmatpush.bf16.msra.mxu0 0
        %467 = vmatpush.bf16.msra.mxu0 %v397
        %468 = vmatpush.bf16.msra.mxu0 %v385
        %469 = vmatmul.bf16.gmra.mxu0 %v433
        %v470 = vpop.f32.mrf.mxu0
        %v471 = vadd.f32 0.0, %v470
        %v472 = vpop.f32.mrf.mxu0
        %473 = vdwg.mxu0
        %474 = vmatpush.bf16.msra.mxu0 0
        %475 = vmatpush.bf16.msra.mxu0 0
        %476 = vmatpush.bf16.msra.mxu0 0
        %477 = vmatpush.bf16.msra.mxu0 0
        %478 = vmatpush.bf16.msra.mxu0 0
        %479 = vmatpush.bf16.msra.mxu0 0
        %480 = vmatpush.bf16.msra.mxu0 %v398
        %481 = vmatpush.bf16.msra.mxu0 %v386
        %482 = vmatmul.bf16.gmra.mxu0 %v433
        %v483 = vpop.f32.mrf.mxu0
        %v484 = vadd.f32 0.0, %v483
        %v485 = vpop.f32.mrf.mxu0
        %486 = vdwg.mxu0
        %487 = vmatpush.bf16.msra.mxu0 0
        %488 = vmatpush.bf16.msra.mxu0 0
        %489 = vmatpush.bf16.msra.mxu0 0
        %490 = vmatpush.bf16.msra.mxu0 0
        %491 = vmatpush.bf16.msra.mxu0 0
        %492 = vmatpush.bf16.msra.mxu0 0
        %493 = vmatpush.bf16.msra.mxu0 %v399
        %494 = vmatpush.bf16.msra.mxu0 %v387
        %495 = vmatmul.bf16.gmra.mxu0 %v433
        %v496 = vpop.f32.mrf.mxu0
        %v497 = vadd.f32 0.0, %v496
        %v498 = vpop.f32.mrf.mxu0
        %499 = vdwg.mxu0
        %500 = vmatpush.bf16.msra.mxu0 0
        %501 = vmatpush.bf16.msra.mxu0 0
        %502 = vmatpush.bf16.msra.mxu0 0
        %503 = vmatpush.bf16.msra.mxu0 0
        %504 = vmatpush.bf16.msra.mxu0 0
        %505 = vmatpush.bf16.msra.mxu0 0
        %506 = vmatpush.bf16.msra.mxu0 %v400
        %507 = vmatpush.bf16.msra.mxu0 %v388
        %508 = vmatmul.bf16.gmra.mxu0 %v433
        %v509 = vpop.f32.mrf.mxu0
        %v510 = vadd.f32 0.0, %v509
        %v511 = vpop.f32.mrf.mxu0
        %512 = vdwg.mxu0
        %513 = vmatpush.bf16.msra.mxu0 0
        %514 = vmatpush.bf16.msra.mxu0 0
        %515 = vmatpush.bf16.msra.mxu0 0
        %516 = vmatpush.bf16.msra.mxu0 0
        %517 = vmatpush.bf16.msra.mxu0 0
        %518 = vmatpush.bf16.msra.mxu0 0
        %519 = vmatpush.bf16.msra.mxu0 %v401
        %520 = vmatpush.bf16.msra.mxu0 %v389
        %521 = vmatmul.bf16.gmra.mxu0 %v433
        %v522 = vpop.f32.mrf.mxu0
        %v523 = vadd.f32 0.0, %v522
        %v524 = vpop.f32.mrf.mxu0
        %525 = vdwg.mxu0
        %526 = vmatpush.bf16.msra.mxu0 0
        %527 = vmatpush.bf16.msra.mxu0 0
        %528 = vmatpush.bf16.msra.mxu0 0
        %529 = vmatpush.bf16.msra.mxu0 0
        %530 = vmatpush.bf16.msra.mxu0 0
        %531 = vmatpush.bf16.msra.mxu0 0
        %532 = vmatpush.bf16.msra.mxu0 %v402
        %533 = vmatpush.bf16.msra.mxu0 %v390
        %534 = vmatmul.bf16.gmra.mxu0 %v433
        %v535 = vpop.f32.mrf.mxu0
        %v536 = vadd.f32 0.0, %v535
        %v537 = vpop.f32.mrf.mxu0
        %538 = vdwg.mxu0
        %539 = vmatpush.bf16.msra.mxu0 0
        %540 = vmatpush.bf16.msra.mxu0 0
        %541 = vmatpush.bf16.msra.mxu0 0
        %542 = vmatpush.bf16.msra.mxu0 0
        %543 = vmatpush.bf16.msra.mxu0 0
        %544 = vmatpush.bf16.msra.mxu0 0
        %545 = vmatpush.bf16.msra.mxu0 %v403
        %546 = vmatpush.bf16.msra.mxu0 %v391
        %547 = vmatmul.bf16.gmra.mxu0 %v433
        %v548 = vpop.f32.mrf.mxu0
        %v549 = vadd.f32 0.0, %v548
        %v550 = vpop.f32.mrf.mxu0
        %551 = vdwg.mxu0
        %552 = vmatpush.bf16.msra.mxu0 0
        %553 = vmatpush.bf16.msra.mxu0 0
        %554 = vmatpush.bf16.msra.mxu0 0
        %555 = vmatpush.bf16.msra.mxu0 0
        %556 = vmatpush.bf16.msra.mxu0 0
        %557 = vmatpush.bf16.msra.mxu0 0
        %558 = vmatpush.bf16.msra.mxu0 %v404
        %559 = vmatpush.bf16.msra.mxu0 %v392
        %560 = vmatmul.bf16.gmra.mxu0 %v433
        %v561 = vpop.f32.mrf.mxu0
        %v562 = vadd.f32 0.0, %v561
        %v563 = vpop.f32.mrf.mxu0
        %564 = vdwg.mxu0
        %565 = vmatpush.bf16.msra.mxu0 0
        %566 = vmatpush.bf16.msra.mxu0 0
        %567 = vmatpush.bf16.msra.mxu0 0
        %568 = vmatpush.bf16.msra.mxu0 0
        %569 = vmatpush.bf16.msra.mxu0 0
        %570 = vmatpush.bf16.msra.mxu0 0
        %571 = vmatpush.bf16.msra.mxu0 %v405
        %572 = vmatpush.bf16.msra.mxu0 %v393
        %573 = vmatmul.bf16.gmra.mxu0 %v433
        %v574 = vpop.f32.mrf.mxu0
        %v575 = vadd.f32 0.0, %v574
        %v576 = vpop.f32.mrf.mxu0
        %577 = vdwg.mxu0
        %578 = vmatpush.bf16.msra.mxu0 0
        %579 = vmatpush.bf16.msra.mxu0 0
        %580 = vmatpush.bf16.msra.mxu0 0
        %581 = vmatpush.bf16.msra.mxu0 0
        %582 = vmatpush.bf16.msra.mxu0 0
        %583 = vmatpush.bf16.msra.mxu0 0
        %584 = vmatpush.bf16.msra.mxu0 %v406
        %585 = vmatpush.bf16.msra.mxu0 %v394
        %586 = vmatmul.bf16.gmra.mxu0 %v433
        %v587 = vpop.f32.mrf.mxu0
        %v588 = vadd.f32 0.0, %v587
        %v589 = vpop.f32.mrf.mxu0
        %590 = vdwg.mxu0
        %v591 = vadd.f32 %v273, %v445
        %v592 = vadd.f32 %v274, %v458
        %v593 = vadd.f32 %v275, %v471
        %v594 = vadd.f32 %v276, %v484
        %v595 = vadd.f32 %v277, %v497
        %v596 = vadd.f32 %v278, %v510
        %v597 = vadd.f32 %v279, %v523
        %v598 = vadd.f32 %v280, %v536
        %v599 = vadd.f32 %v281, %v549
        %v600 = vadd.f32 %v282, %v562
        %v601 = vadd.f32 %v283, %v575
        %v602 = vadd.f32 %v284, %v588
        %603 = vst [vmem:[#allocation2] sm:$0xff] %v591
        %604 = vst [vmem:[#allocation2 + $0x8] sm:$0xff] %v592
        %605 = vst [vmem:[#allocation2 + $0x10] sm:$0xff] %v593
        %606 = vst [vmem:[#allocation2 + $0x18] sm:$0xff] %v594
        %607 = vst [vmem:[#allocation2 + $0x20] sm:$0xff] %v595
        %608 = vst [vmem:[#allocation2 + $0x28] sm:$0xff] %v596
        %609 = vst [vmem:[#allocation2 + $0x30] sm:$0xff] %v597
        %610 = vst [vmem:[#allocation2 + $0x38] sm:$0xff] %v598
        %611 = vst [vmem:[#allocation2 + $0x40] sm:$0xff] %v599
        %612 = vst [vmem:[#allocation2 + $0x48] sm:$0xff] %v600
        %613 = vst [vmem:[#allocation2 + $0x50] sm:$0xff] %v601
        %614 = vst [vmem:[#allocation2 + $0x58] sm:$0xff] %v602
        // Predicated region
        $region49: #{tpu_custom_call.1} parent=31 // pred_check
          %p615 = pneg %p257
        $region50: #{tpu_custom_call.1} parent=31 // pred_check_branch
          %617 = sbr.rel (%p615) target = $region52
        $region51: #{tpu_custom_call.1} parent=31 // pred_region
          %v618 = vld [vmem:[#allocation2] sm:$0xff]
          %v619 = vld [vmem:[#allocation2 + $0x8] sm:$0xff]
          %v620 = vld [vmem:[#allocation2 + $0x10] sm:$0xff]
          %v621 = vld [vmem:[#allocation2 + $0x18] sm:$0xff]
          %v622 = vld [vmem:[#allocation2 + $0x20] sm:$0xff]
          %v623 = vld [vmem:[#allocation2 + $0x28] sm:$0xff]
          %v624 = vld [vmem:[#allocation2 + $0x30] sm:$0xff]
          %v625 = vld [vmem:[#allocation2 + $0x38] sm:$0xff]
          %v626 = vld [vmem:[#allocation2 + $0x40] sm:$0xff]
          %v627 = vld [vmem:[#allocation2 + $0x48] sm:$0xff]
          %v628 = vld [vmem:[#allocation2 + $0x50] sm:$0xff]
          %v629 = vld [vmem:[#allocation2 + $0x58] sm:$0xff]
          %v630 = vld [vmem:[#allocation8] sm:$0xff]
          %v631 = vld [vmem:[#allocation8 + $0x8] sm:$0xf]
          %v634 = vperm.slane %v630, 0
          %v635 = vperm.slane %v630, 1
          %v636 = vperm.slane %v630, 2
          %v637 = vperm.slane %v630, 3
          %v638 = vperm.slane %v630, 4
          %v639 = vperm.slane %v630, 5
          %v640 = vperm.slane %v630, 6
          %v641 = vperm.slane %v630, 7
          %v642 = vperm.slane %v631, 0
          %v643 = vperm.slane %v631, 1
          %v644 = vperm.slane %v631, 2
          %v645 = vperm.slane %v631, 3
          %v658 = vadd.f32 %v618, %v634
          %v659 = vadd.f32 %v619, %v635
          %v660 = vadd.f32 %v620, %v636
          %v661 = vadd.f32 %v621, %v637
          %v662 = vadd.f32 %v622, %v638
          %v663 = vadd.f32 %v623, %v639
          %v664 = vadd.f32 %v624, %v640
          %v665 = vadd.f32 %v625, %v641
          %v666 = vadd.f32 %v626, %v642
          %v667 = vadd.f32 %v627, %v643
          %v668 = vadd.f32 %v628, %v644
          %v669 = vadd.f32 %v629, %v645
          %v670 = vpack.c.bf16 %v659, %v658
          %v671 = vpack.c.bf16 %v661, %v660
          %v672 = vpack.c.bf16 %v663, %v662
          %v673 = vpack.c.bf16 %v665, %v664
          %v674 = vpack.c.bf16 %v667, %v666
          %v675 = vpack.c.bf16 %v669, %v668
          %676 = vst [vmem:[%s254] sm:$0xff] %v670
          %677 = vst [vmem:[%s254 + $0x8] sm:$0xff] %v671
          %678 = vst [vmem:[%s254 + $0x10] sm:$0xff] %v672
          %679 = vst [vmem:[%s254 + $0x18] sm:$0xff] %v673
          %680 = vst [vmem:[%s254 + $0x20] sm:$0xff] %v674
          %681 = vst [vmem:[%s254 + $0x28] sm:$0xff] %v675
        $region52: #{tpu_custom_call.1} parent=31 // pred_fallthru
          _
        %s682 = sand.u32 %s127, 1
        %s683 = scalar_lea.sflag [#allocation5], %s682
        %s684 = sand.u32 %s127, 1
        %s685 = smul.addr %s684, 48
        %s686 = scalar_lea.vmem [#allocation9], %s685
        // Predicated region
        $region53: #{tpu_custom_call.1} parent=31 // pred_check
          %p687 = pneg %p137
        $region54: #{tpu_custom_call.1} parent=31 // pred_check_branch
          %689 = sbr.rel (%p687) target = $region56
        $region55: #{tpu_custom_call.1} parent=31 // pred_region
          %691 = vsyncadd %s683, 0
          %s692 = smul.addr %s27, 12
          %s693 = smul.addr %s26, 12
          %s694 = sadd.s32 %s692, %s693
          %s695 = smul.addr %s694, 4
          %s696 = scalar_lea.hbm %s3, %s695
          %s698 = sshll.u32 %s686, 4
          %s699 = int_to_ptr.vmem [resolvable:$true] %s698
          %s700 = sshll.u32 %s696, 4
          %s701 = int_to_ptr.hbm [resolvable:$true] %s700
          %703 = dma.vmem_to_hbm [thread:$0]  %s699, 768, %s701, %s683
        $region56: #{tpu_custom_call.1} parent=31 // pred_fallthru
          _
      $region32: #{tpu_custom_call.1} parent=5 // pred_fallthru
        _
      %p704 = scmp.le.s32.totalorder 2, %s16
      // Predicated region
      $region57: #{tpu_custom_call.1} parent=5 // pred_check
        %p705 = pneg %p704
      $region58: #{tpu_custom_call.1} parent=5 // pred_check_branch
        %707 = sbr.rel (%p705) target = $region60
      $region59: #{tpu_custom_call.1} parent=5 // pred_region
        %s708 = ssub.s32 %s16, 2
        // Predicated region
        $region61: #{tpu_custom_call.1} parent=59 // pred_check
          %p709 = pneg %p143
        $region62: #{tpu_custom_call.1} parent=59 // pred_check_branch
          %711 = sbr.rel (%p709) target = $region64
        $region63: #{tpu_custom_call.1} parent=59 // pred_region
          %s712 = sand.u32 %s128, 1
          %s713 = scalar_lea.sflag [#allocation5], %s712
          %s714 = sand.u32 %s128, 1
          %s715 = smul.addr %s714, 48
          %s716 = scalar_lea.vmem [#allocation9], %s715
          %718 = dma.done %s713, 768
        $region64: #{tpu_custom_call.1} parent=59 // pred_fallthru
          _
      $region60: #{tpu_custom_call.1} parent=5 // pred_fallthru
        _
    $region6: #{tpu_custom_call.1} parent=1 // loop_footer
      %s20 = sadd.s32 1, %s16
    $region7: #{tpu_custom_call.1} parent=1 // loop_footer_branch
      %15 = sbr.rel target = $region3
    $region8: #{tpu_custom_call.1} parent=1 // loop_exit
      _
    %719 = vsyncpa [#allocation4], 1
    %s720 = scalar_lea.sflag [#allocation4], 1
    %721 = vsyncpa %s720, 1
    %722 = vsyncpa [#allocation7], 1
    %723 = vsyncpa [#allocation5], 1
    %s724 = scalar_lea.sflag [#allocation5], 1
    %725 = vsyncpa %s724, 1

</llo_original>
